<compile_context>
chip_gen: v6e
topology: v6e:2x2x1
jax: 0.10.0
libtpu: 0.0.40
codegen_flags: <defaults>
</compile_context>

<pallas_src>
import math
import functools

import jax
import jax.numpy as jnp
from jax.experimental import pallas as pl
from jax.experimental.pallas import tpu as pltpu


def _attention_kernel(p_ref, e_ref, ewte_ref, wq_ref, wo_ref, o_ref, *, seq_len, mxu_dtype):
    """One grid step processes `n_rows = n_seq * seq_len` flattened (batch, pos) rows.

    p_ref   : (n_rows, E)  positional embeddings (batch-major flattened)
    e_ref   : (n_rows, E)  token embeddings      (batch-major flattened)
    ewte_ref: (1, E)       mean of wte.weight over the vocab (E_wte collapse)
    wq_ref  : (H, E)       diagonals of W_q (== W_k), one row per head, f32
    wo_ref  : (E, H*E)     W_o in its native torch Linear layout, already in mxu_dtype
    o_ref   : (n_rows, E)  output rows
    """
    n_rows, d_embed = p_ref.shape
    n_head = wq_ref.shape[0]
    n_seq = n_rows // seq_len                      # batch elements folded into this step
    inv_sqrt_e = 1.0 / math.sqrt(d_embed)

    p = p_ref[...]                                                   # (N, E) f32

    # Head-invariant quantities, built once per grid step (not per head).
    v = (e_ref[...] - ewte_ref[...]).astype(mxu_dtype)               # (N, E)

    # Block-diagonal causal mask over the folded rows: row i attends to col j iff they
    # belong to the same sequence and j <= i.  Built from comparisons only (no vector
    # integer div/mod).  The diagonal is always unmasked, so every row of the masked
    # scores keeps at least one finite entry (no NaN from exp of -inf rows).
    row = jax.lax.broadcasted_iota(jnp.int32, (n_rows, n_rows), 0)
    col = jax.lax.broadcasted_iota(jnp.int32, (n_rows, n_rows), 1)
    mask = row >= col
    for b in range(1, n_seq):                      # static unroll over sequence cuts
        cut = b * seq_len
        mask = mask & ~((col < cut) & (row >= cut))

    # N_reg = 1/(pos_in_sequence + 1), folded into the softmax normalization.
    rows = jax.lax.broadcasted_iota(jnp.int32, (n_rows, 1), 0)
    pos = rows
    for b in range(1, n_seq):
        pos = jnp.where(rows >= b * seq_len, pos - seq_len, pos)
    n_reg = 1.0 / (pos.astype(jnp.float32) + 1.0)                    # (N, 1)

    out = None
    for h in range(n_head):                                          # static unroll
        # Q_h = p @ diag(W_q[h]) = p * W_q[h];  K_h == Q_h (W_k is the same Parameter).
        q = (p * wq_ref[pl.ds(h, 1), :]).astype(mxu_dtype)           # (N, E)
        # scores = Q K^T / sqrt(E) as a contraction (no materialized transpose).
        scores = jax.lax.dot_general(
            q, q, (((1,), (1,)), ((), ())),
            preferred_element_type=jnp.float32) * inv_sqrt_e         # (N, N) f32
        scores = jnp.where(mask, scores, -jnp.inf)
        m = jnp.max(scores, axis=-1, keepdims=True)
        ex = jnp.exp(scores - m)
        denom = jnp.sum(ex, axis=-1, keepdims=True)
        # Exact reciprocal (EUP-resident); N_reg folded into the normalization.
        inv = n_reg * pl.reciprocal(denom, approx=False)             # (N, 1) f32
        probs = (ex * inv).astype(mxu_dtype)                         # (N, N)
        head_out = jax.lax.dot_general(
            probs, v, (((1,), (0,)), ((), ())),
            preferred_element_type=jnp.float32)                      # (N, E) f32
        # Per-head projection accumulation against W_o's native (E, H*E) layout:
        #   out += head_out_h @ W_o[:, h*E:(h+1)*E]^T
        # (identical FLOPs to the concat + single projection, but no lane-misaligned
        #  (N, H*E) concat / relayout pass).
        wo_h = wo_ref[:, pl.ds(h * d_embed, d_embed)]                # (E, E), mxu_dtype
        proj = jax.lax.dot_general(
            head_out.astype(mxu_dtype), wo_h, (((1,), (1,)), ((), ())),
            preferred_element_type=jnp.float32)                      # (N, E) f32
        out = proj if out is None else out + proj

    o_ref[...] = out.astype(o_ref.dtype)


@functools.partial(jax.jit, static_argnames=("n_head", "mxu_bf16", "fold_batch"))
def attention_forward(x, e, p, wte, w_q, w_o, *, n_head, mxu_bf16=False, fold_batch=True):
    """x, e, p: (B, S, E); wte: (V, E); w_q: (H, E); w_o: (E, H*E) torch Linear weight.

    mxu_bf16=True uses bf16 MXU operands (W_o pre-cast in the wrapper) with f32
    accumulation -- valid on v5e/v6e/v7x; all element-wise math (softmax, masking,
    N_reg) stays f32 in both modes.
    fold_batch=True (default) runs a single grid step over all B*S rows (best on
    v5e/v6e, where per-step overhead dominates at these shapes); fold_batch=False keeps
    grid=(B,) marked "parallel" so v7x's two TensorCores both get work.
    """
    B, S, E = x.shape
    del x  # use_skip=False and ln_x(x) only feeds E_wte, which zeroes its input.

    # E_wte collapses to the vocab-mean of wte.weight (see header comment).
    ewte = jnp.mean(wte.astype(jnp.float32), axis=0, keepdims=True)   # (1, E)

    mxu_dtype = jnp.bfloat16 if mxu_bf16 else jnp.float32

    # Flatten (B, S, E) -> (B*S, E) in the wrapper (free, row-major); the kernel works
    # on flattened row slabs, so no in-kernel reshapes are needed.
    p_flat = p.astype(jnp.float32).reshape(B * S, E)
    e_flat = e.astype(jnp.float32).reshape(B * S, E)
    w_q_f = w_q.astype(jnp.float32)                                   # elementwise use: f32
    # Pre-cast W_o once (halves its per-step DMA bytes and removes the per-step cast of
    # a constant operand when mxu_bf16=True).
    w_o_in = w_o.astype(mxu_dtype)

    num_steps = 1 if fold_batch else B
    rows = (B * S) // num_steps

    kernel = functools.partial(_attention_kernel, seq_len=S, mxu_dtype=mxu_dtype)

    grid_spec = pltpu.PrefetchScalarGridSpec(
        num_scalar_prefetch=0,
        grid=(num_steps,),
        in_specs=[
            pl.BlockSpec((rows, E), lambda i: (i, 0)),                # p (flattened rows)
            pl.BlockSpec((rows, E), lambda i: (i, 0)),                # e (flattened rows)
            pl.BlockSpec((1, E), lambda i: (0, 0)),                   # mean(wte)
            pl.BlockSpec((n_head, E), lambda i: (0, 0)),              # W_q (== W_k) diags
            pl.BlockSpec((E, n_head * E), lambda i: (0, 0)),          # W_o, native layout
        ],
        out_specs=pl.BlockSpec((rows, E), lambda i: (i, 0)),
    )

    out_flat = pl.pallas_call(
        kernel,
        out_shape=jax.ShapeDtypeStruct((B * S, E), jnp.float32),
        grid_spec=grid_spec,
        # NOTE(scaling): for large S, add a key-tile grid axis with online softmax
        # (earlier on v7x: 64 MiB VMEM) and set vmem_limit_bytes explicitly here.
        compiler_params=pltpu.CompilerParams(
            dimension_semantics=("parallel",)),
    )(p_flat, e_flat, ewte, w_q_f, w_o_in)

    return out_flat.reshape(B, S, E)


def _reference(x, e, p, wte, w_q, w_o, n_head):
    """Pure-JAX transcription of the PyTorch forward (eval mode)."""
    B, S, E = x.shape
    ewte = jnp.mean(wte, axis=0)                                # E_wte collapses
    q = p[:, None, :, :] * w_q[None, :, None, :]                # (B,H,S,E)
    k = q                                                       # W_k is W_q
    v = jnp.broadcast_to((e - ewte)[:, None], (B, n_head, S, E))
    scores = jnp.einsum("bhse,bhte->bhst", q, k) / math.sqrt(E)
    mask = jnp.tril(jnp.ones((S, S), dtype=bool))
    scores = jnp.where(mask[None, None], scores, -jnp.inf)
    probs = jax.nn.softmax(scores, axis=-1)
    out = jnp.einsum("bhst,bhte->bhse", probs, v)
    n_reg = 1.0 / jnp.arange(1, S + 1, dtype=jnp.float32)[:, None]
    out = out * n_reg
    out = out.transpose(0, 2, 1, 3).reshape(B, S, n_head * E)
    return out @ w_o.T


if __name__ == "__main__":
    # Small config consistent with the module.
    B, S, E = 2, 16, 32
    n_head, n_layer, vocab = 2, 2, 64

    key = jax.random.PRNGKey(0)
    kx, ke, kp, kwte, kwq, kwo = jax.random.split(key, 6)

    x = jax.random.normal(kx, (B, S, E), jnp.float32)
    e = jax.random.normal(ke, (B, S, E), jnp.float32)
    p = jax.random.normal(kp, (B, S, E), jnp.float32)

    # Deterministic parameter init mirroring _init_weights().
    wte = jax.random.normal(kwte, (vocab, E), jnp.float32) * 0.02
    w_q = jax.random.normal(kwq, (n_head, E), jnp.float32) * 0.02          # == W_k
    w_o = jax.random.normal(kwo, (E, n_head * E), jnp.float32) * (
        0.02 / math.sqrt(2 * n_layer))

    ref = _reference(x, e, p, wte, w_q, w_o, n_head)

    # Default path: single grid step over all batch rows, f32 MXU operands.
    out = attention_forward(x, e, p, wte, w_q, w_o, n_head=n_head)
    out = jax.block_until_ready(out)
    assert out.shape == (B, S, E)
    assert jnp.allclose(out, ref, rtol=1e-2, atol=2e-3), (
        float(jnp.max(jnp.abs(out - ref))))

    # v7x-style path: grid=(B,) marked "parallel" so both TensorCores get a step.
    out_split = attention_forward(x, e, p, wte, w_q, w_o, n_head=n_head,
                                  fold_batch=False)
    out_split = jax.block_until_ready(out_split)
    assert jnp.allclose(out_split, ref, rtol=1e-2, atol=2e-3), (
        float(jnp.max(jnp.abs(out_split - ref))))

    # bf16 MXU-operand fast path (f32 accumulation, f32 element-wise); looser tolerance.
    out_bf16 = attention_forward(x, e, p, wte, w_q, w_o, n_head=n_head, mxu_bf16=True)
    out_bf16 = jax.block_until_ready(out_bf16)
    assert jnp.allclose(out_bf16, ref, rtol=5e-2, atol=1e-2), (
        float(jnp.max(jnp.abs(out_bf16 - ref))))

    print("KERNEL_OK")
</pallas_src>

<mosaic_0001>
module attributes {stable_mosaic.version = 11 : i64} {
  func.func @_attention_kernel(%arg0: i32, %arg1: memref<32x32xf32, #tpu.memory_space<vmem>>, %arg2: memref<32x32xf32, #tpu.memory_space<vmem>>, %arg3: memref<1x32xf32, #tpu.memory_space<vmem>>, %arg4: memref<2x32xf32, #tpu.memory_space<vmem>>, %arg5: memref<32x64xf32, #tpu.memory_space<vmem>>, %arg6: memref<32x32xf32, #tpu.memory_space<vmem>>) attributes {dimension_semantics = [#tpu.dimension_semantics<parallel>], iteration_bounds = array<i64: 1>, scalar_prefetch = 0 : i64, scratch_operands = 0 : i64, tpu.core_type = #tpu.core_type<tc>, window_params = [{transform_indices = @transform_0, window_bounds = array<i64: 32, 32>}, {transform_indices = @transform_1, window_bounds = array<i64: 32, 32>}, {pipeline_mode = #tpu.pipeline_mode<synchronous>, transform_indices = @transform_2, window_bounds = array<i64: 1, 32>}, {pipeline_mode = #tpu.pipeline_mode<synchronous>, transform_indices = @transform_3, window_bounds = array<i64: 2, 32>}, {pipeline_mode = #tpu.pipeline_mode<synchronous>, transform_indices = @transform_4, window_bounds = array<i64: 32, 64>}, {transform_indices = @transform_5, window_bounds = array<i64: 32, 32>}]} {
    %c0 = arith.constant 0 : index
    %c0_0 = arith.constant 0 : index
    %0 = vector.load %arg1[%c0, %c0_0] : memref<32x32xf32, #tpu.memory_space<vmem>>, vector<32x32xf32>
    %c0_1 = arith.constant 0 : index
    %c0_2 = arith.constant 0 : index
    %1 = vector.load %arg2[%c0_1, %c0_2] : memref<32x32xf32, #tpu.memory_space<vmem>>, vector<32x32xf32>
    %c0_3 = arith.constant 0 : index
    %c0_4 = arith.constant 0 : index
    %2 = vector.load %arg3[%c0_3, %c0_4] : memref<1x32xf32, #tpu.memory_space<vmem>>, vector<1x32xf32>
    %3 = vector.broadcast %2 : vector<1x32xf32> to vector<32x32xf32>
    %4 = arith.subf %1, %3 : vector<32x32xf32>
    %5 = tpu.iota {dimensions = array<i32: 0>} : vector<32x32xi32>
    %6 = tpu.iota {dimensions = array<i32: 1>} : vector<32x32xi32>
    %7 = arith.cmpi sge, %5, %6 : vector<32x32xi32>
    %c16_i32 = arith.constant 16 : i32
    %8 = vector.broadcast %c16_i32 : i32 to vector<32x32xi32>
    %9 = arith.cmpi slt, %6, %8 : vector<32x32xi32>
    %c16_i32_5 = arith.constant 16 : i32
    %10 = vector.broadcast %c16_i32_5 : i32 to vector<32x32xi32>
    %11 = arith.cmpi sge, %5, %10 : vector<32x32xi32>
    %12 = arith.andi %9, %11 : vector<32x32xi1>
    %cst = arith.constant dense<true> : vector<32x32xi1>
    %13 = arith.xori %12, %cst : vector<32x32xi1>
    %14 = arith.andi %7, %13 : vector<32x32xi1>
    %15 = tpu.iota {dimensions = array<i32: 0>} : vector<32x1xi32>
    %c16_i32_6 = arith.constant 16 : i32
    %16 = vector.broadcast %c16_i32_6 : i32 to vector<32x1xi32>
    %17 = arith.cmpi sge, %15, %16 : vector<32x1xi32>
    %c16_i32_7 = arith.constant 16 : i32
    %18 = vector.broadcast %c16_i32_7 : i32 to vector<32x1xi32>
    %19 = arith.subi %15, %18 : vector<32x1xi32>
    %20 = arith.select %17, %19, %15 : vector<32x1xi1>, vector<32x1xi32>
    %21 = arith.sitofp %20 : vector<32x1xi32> to vector<32x1xf32>
    %cst_8 = arith.constant 1.000000e+00 : f32
    %22 = vector.broadcast %cst_8 : f32 to vector<32x1xf32>
    %23 = arith.addf %21, %22 : vector<32x1xf32>
    %cst_9 = arith.constant 1.000000e+00 : f32
    %24 = vector.broadcast %cst_9 : f32 to vector<32x1xf32>
    %25 = arith.divf %24, %23 : vector<32x1xf32>
    %c0_10 = arith.constant 0 : index
    %c0_11 = arith.constant 0 : index
    %26 = vector.load %arg4[%c0_10, %c0_11] : memref<2x32xf32, #tpu.memory_space<vmem>>, vector<1x32xf32>
    %27 = vector.broadcast %26 : vector<1x32xf32> to vector<32x32xf32>
    %28 = arith.mulf %0, %27 : vector<32x32xf32>
    %cst_12 = arith.constant dense<0.000000e+00> : vector<32x32xf32>
    %29 = tpu.matmul %28, %28, %cst_12 {dimension_numbers = #tpu.dot_dimension_numbers<[1], [1], [0], [0], [0, 0, 1, 0], [], []>} : vector<32x32xf32>, vector<32x32xf32>, vector<32x32xf32> -> vector<32x32xf32>
    %cst_13 = arith.constant 0.176776692 : f32
    %30 = vector.broadcast %cst_13 : f32 to vector<32x32xf32>
    %31 = arith.mulf %29, %30 : vector<32x32xf32>
    %cst_14 = arith.constant 0xFF800000 : f32
    %32 = vector.broadcast %cst_14 : f32 to vector<32x32xf32>
    %33 = arith.select %14, %31, %32 : vector<32x32xi1>, vector<32x32xf32>
    %cst_15 = arith.constant dense<0xFF800000> : vector<32xf32>
    %34 = vector.multi_reduction <maximumf>, %33, %cst_15 [1] : vector<32x32xf32> to vector<32xf32>
    %35 = vector.shape_cast %34 : vector<32xf32> to vector<32x1xf32>
    %36 = vector.broadcast %35 : vector<32x1xf32> to vector<32x32xf32>
    %37 = arith.subf %33, %36 : vector<32x32xf32>
    %38 = math.exp %37 : vector<32x32xf32>
    %cst_16 = arith.constant dense<0.000000e+00> : vector<32xf32>
    %39 = vector.multi_reduction <add>, %38, %cst_16 [1] : vector<32x32xf32> to vector<32xf32>
    %40 = vector.shape_cast %39 : vector<32xf32> to vector<32x1xf32>
    %41 = tpu.reciprocal %40 : vector<32x1xf32> -> vector<32x1xf32>
    %42 = arith.mulf %25, %41 : vector<32x1xf32>
    %43 = vector.broadcast %42 : vector<32x1xf32> to vector<32x32xf32>
    %44 = arith.mulf %38, %43 : vector<32x32xf32>
    %cst_17 = arith.constant dense<0.000000e+00> : vector<32x32xf32>
    %45 = tpu.matmul %44, %4, %cst_17 {dimension_numbers = #tpu.dot_dimension_numbers<[1], [0], [0], [1], [0, 0, 1, 1], [], []>} : vector<32x32xf32>, vector<32x32xf32>, vector<32x32xf32> -> vector<32x32xf32>
    %c0_18 = arith.constant 0 : index
    %c0_19 = arith.constant 0 : index
    %46 = vector.load %arg5[%c0_18, %c0_19] : memref<32x64xf32, #tpu.memory_space<vmem>>, vector<32x32xf32>
    %cst_20 = arith.constant dense<0.000000e+00> : vector<32x32xf32>
    %47 = tpu.matmul %45, %46, %cst_20 {dimension_numbers = #tpu.dot_dimension_numbers<[1], [1], [0], [0], [0, 0, 1, 0], [], []>} : vector<32x32xf32>, vector<32x32xf32>, vector<32x32xf32> -> vector<32x32xf32>
    %c1 = arith.constant 1 : index
    %c0_21 = arith.constant 0 : index
    %48 = vector.load %arg4[%c1, %c0_21] : memref<2x32xf32, #tpu.memory_space<vmem>>, vector<1x32xf32>
    %49 = vector.broadcast %48 : vector<1x32xf32> to vector<32x32xf32>
    %50 = arith.mulf %0, %49 : vector<32x32xf32>
    %cst_22 = arith.constant dense<0.000000e+00> : vector<32x32xf32>
    %51 = tpu.matmul %50, %50, %cst_22 {dimension_numbers = #tpu.dot_dimension_numbers<[1], [1], [0], [0], [0, 0, 1, 0], [], []>} : vector<32x32xf32>, vector<32x32xf32>, vector<32x32xf32> -> vector<32x32xf32>
    %cst_23 = arith.constant 0.176776692 : f32
    %52 = vector.broadcast %cst_23 : f32 to vector<32x32xf32>
    %53 = arith.mulf %51, %52 : vector<32x32xf32>
    %cst_24 = arith.constant 0xFF800000 : f32
    %54 = vector.broadcast %cst_24 : f32 to vector<32x32xf32>
    %55 = arith.select %14, %53, %54 : vector<32x32xi1>, vector<32x32xf32>
    %cst_25 = arith.constant dense<0xFF800000> : vector<32xf32>
    %56 = vector.multi_reduction <maximumf>, %55, %cst_25 [1] : vector<32x32xf32> to vector<32xf32>
    %57 = vector.shape_cast %56 : vector<32xf32> to vector<32x1xf32>
    %58 = vector.broadcast %57 : vector<32x1xf32> to vector<32x32xf32>
    %59 = arith.subf %55, %58 : vector<32x32xf32>
    %60 = math.exp %59 : vector<32x32xf32>
    %cst_26 = arith.constant dense<0.000000e+00> : vector<32xf32>
    %61 = vector.multi_reduction <add>, %60, %cst_26 [1] : vector<32x32xf32> to vector<32xf32>
    %62 = vector.shape_cast %61 : vector<32xf32> to vector<32x1xf32>
    %63 = tpu.reciprocal %62 : vector<32x1xf32> -> vector<32x1xf32>
    %64 = arith.mulf %25, %63 : vector<32x1xf32>
    %65 = vector.broadcast %64 : vector<32x1xf32> to vector<32x32xf32>
    %66 = arith.mulf %60, %65 : vector<32x32xf32>
    %cst_27 = arith.constant dense<0.000000e+00> : vector<32x32xf32>
    %67 = tpu.matmul %66, %4, %cst_27 {dimension_numbers = #tpu.dot_dimension_numbers<[1], [0], [0], [1], [0, 0, 1, 1], [], []>} : vector<32x32xf32>, vector<32x32xf32>, vector<32x32xf32> -> vector<32x32xf32>
    %c0_28 = arith.constant 0 : index
    %c32 = arith.constant 32 : index
    %68 = vector.load %arg5[%c0_28, %c32] : memref<32x64xf32, #tpu.memory_space<vmem>>, vector<32x32xf32>
    %cst_29 = arith.constant dense<0.000000e+00> : vector<32x32xf32>
    %69 = tpu.matmul %67, %68, %cst_29 {dimension_numbers = #tpu.dot_dimension_numbers<[1], [1], [0], [0], [0, 0, 1, 0], [], []>} : vector<32x32xf32>, vector<32x32xf32>, vector<32x32xf32> -> vector<32x32xf32>
    %70 = arith.addf %47, %69 : vector<32x32xf32>
    %c0_30 = arith.constant 0 : index
    %c0_31 = arith.constant 0 : index
    %71 = vector.load %arg6[%c0_30, %c0_31] : memref<32x32xf32, #tpu.memory_space<vmem>>, vector<32x32xf32>
    tpu.vector_store %arg6[%c0_30, %c0_31], %70 {strides = array<i32>} : memref<32x32xf32, #tpu.memory_space<vmem>>, vector<32x32xf32>,
    return
  }
  func.func @transform_0(%arg0: i32) -> (i32, i32) {
    %c0_i32 = arith.constant 0 : i32
    %c0_i32_0 = arith.constant 0 : i32
    return %arg0, %c0_i32 : i32, i32
  }
  func.func @transform_1(%arg0: i32) -> (i32, i32) {
    %c0_i32 = arith.constant 0 : i32
    %c0_i32_0 = arith.constant 0 : i32
    return %arg0, %c0_i32 : i32, i32
  }
  func.func @transform_2(%arg0: i32) -> (i32, i32) {
    %c0_i32 = arith.constant 0 : i32
    %c0_i32_0 = arith.constant 0 : i32
    %c0_i32_1 = arith.constant 0 : i32
    return %c0_i32, %c0_i32_0 : i32, i32
  }
  func.func @transform_3(%arg0: i32) -> (i32, i32) {
    %c0_i32 = arith.constant 0 : i32
    %c0_i32_0 = arith.constant 0 : i32
    %c0_i32_1 = arith.constant 0 : i32
    return %c0_i32, %c0_i32_0 : i32, i32
  }
  func.func @transform_4(%arg0: i32) -> (i32, i32) {
    %c0_i32 = arith.constant 0 : i32
    %c0_i32_0 = arith.constant 0 : i32
    %c0_i32_1 = arith.constant 0 : i32
    return %c0_i32, %c0_i32_0 : i32, i32
  }
  func.func @transform_5(%arg0: i32) -> (i32, i32) {
    %c0_i32 = arith.constant 0 : i32
    %c0_i32_0 = arith.constant 0 : i32
    return %arg0, %c0_i32 : i32, i32
  }
}

</mosaic_0001>

<llo_original>
// kernel: attention_forward.1
$region0: #{attention_forward.1}
  #allocation0 [shape = 'u32[]', space=smem, size = 0x4, offset = 0x4, fixed_abs, tag = 'smem constant byte address 0x4 - core index']
  #allocation1 [shape = 'u32[144,128]{1,0:T(1,128)}', space=vmem, size = 0x12000, scoped, tag = 'internal scratch']
  %s0 = inlined_call_operand.vmem [shape: f32[32,32], index: 0, kind: input, shape index: {}]
  %s1 = inlined_call_operand.hbm [shape: f32[32,32], index: 1, kind: input, shape index: {}]
  %s2 = inlined_call_operand.vmem [shape: f32[1,32], index: 2, kind: input, shape index: {}]
  %s3 = inlined_call_operand.vmem [shape: f32[2,32], index: 3, kind: input, shape index: {}]
  %s4 = inlined_call_operand.hbm [shape: f32[32,64], index: 4, kind: input, shape index: {}]
  %s5 = inlined_call_operand.hbm [shape: f32[32,32], index: 5, kind: output, shape index: {}]
  %s6 = sld [smem:[#allocation0]]
  $region38: #{attention_forward.1} parent=0
    _
  %s8 = ssub.s32 1, %s6
  %s9 = scalar_select 0, %s8, %s6
  $region1: #{attention_forward.1} parent=0
    #allocation2 [shape = 'u8[16384]{0}', space=vmem, size = 0x4000, scoped, tag = 'input window, operand 1, single buffered']
    #allocation3 [shape = 's32[1]{0}', space=sflag, size = 0x4, scoped, tag = 'scoped memory for attention_forward.1']
    #allocation4 [shape = 's32[1]{0}', space=sflag, size = 0x4, scoped, tag = 'scoped memory for attention_forward.1']
    #allocation5 [shape = 'u8[16384]{0}', space=vmem, size = 0x4000, scoped, tag = 'input window, operand 4, single buffered']
    #allocation6 [shape = 's32[1]{0}', space=sflag, size = 0x4, scoped, tag = 'scoped memory for attention_forward.1']
    #allocation7 [shape = 'u8[16384]{0}', space=vmem, size = 0x4000, scoped, tag = 'output window, operand 0, single buffered']
    %10 = vsyncpa [#allocation3], 0
    %11 = vsyncpa [#allocation6], 0
    %12 = vsyncpa [#allocation4], 0
    // Predicated region
    $region2: #{attention_forward.1} parent=1 // pred_check
      _
    $region3: #{attention_forward.1} parent=1 // pred_check_branch
      %14 = sbr.rel (0) target = $region5
    $region4: #{attention_forward.1} parent=1 // pred_region
      _
    $region5: #{attention_forward.1} parent=1 // pred_fallthru
      _
    // Predicated region
    $region6: #{attention_forward.1} parent=1 // pred_check
      _
    $region7: #{attention_forward.1} parent=1 // pred_check_branch
      %16 = sbr.rel (0) target = $region9
    $region8: #{attention_forward.1} parent=1 // pred_region
      %s18 = ssub.s32 512, 512
      %19 = vsyncadd [#allocation3], %s18
      %s20 = sshll.u32 [#allocation2], 4
      %s21 = int_to_ptr.vmem [resolvable:$true] %s20
      %26 = dma.hbm_to_vmem [thread:$0]  %s1, 512, %s21, [#allocation3], 128, 128, 8
    $region9: #{attention_forward.1} parent=1 // pred_fallthru
      _
    // Predicated region
    $region10: #{attention_forward.1} parent=1 // pred_check
      _
    $region11: #{attention_forward.1} parent=1 // pred_check_branch
      %28 = sbr.rel (0) target = $region13
    $region12: #{attention_forward.1} parent=1 // pred_region
      _
    $region13: #{attention_forward.1} parent=1 // pred_fallthru
      _
    // Predicated region
    $region14: #{attention_forward.1} parent=1 // pred_check
      _
    $region15: #{attention_forward.1} parent=1 // pred_check_branch
      %30 = sbr.rel (0) target = $region17
    $region16: #{attention_forward.1} parent=1 // pred_region
      _
    $region17: #{attention_forward.1} parent=1 // pred_fallthru
      _
    // Predicated region
    $region18: #{attention_forward.1} parent=1 // pred_check
      _
    $region19: #{attention_forward.1} parent=1 // pred_check_branch
      %32 = sbr.rel (0) target = $region21
    $region20: #{attention_forward.1} parent=1 // pred_region
      %s34 = ssub.s32 512, 512
      %35 = vsyncadd [#allocation6], %s34
      %s36 = sshll.u32 [#allocation5], 4
      %s37 = int_to_ptr.vmem [resolvable:$true] %s36
      %42 = dma.hbm_to_vmem [thread:$0]  %s4, 512, %s37, [#allocation6], 128, 128, 8
    $region21: #{attention_forward.1} parent=1 // pred_fallthru
      _
    // Predicated region
    $region22: #{attention_forward.1} parent=1 // pred_check
      _
    $region23: #{attention_forward.1} parent=1 // pred_check_branch
      %44 = sbr.rel (0) target = $region25
    $region24: #{attention_forward.1} parent=1 // pred_region
      %45 = dma.done [#allocation3], 512
    $region25: #{attention_forward.1} parent=1 // pred_fallthru
      _
    // Predicated region
    $region26: #{attention_forward.1} parent=1 // pred_check
      _
    $region27: #{attention_forward.1} parent=1 // pred_check_branch
      %47 = sbr.rel (0) target = $region29
    $region28: #{attention_forward.1} parent=1 // pred_region
      %48 = dma.done [#allocation6], 512
    $region29: #{attention_forward.1} parent=1 // pred_fallthru
      _
    %v49 = vld [vmem:[%s0] sm:$0xff]
    %v50 = vld [vmem:[%s0 + $0x8] sm:$0xff]
    %v51 = vld [vmem:[%s0 + $0x10] sm:$0xff]
    %v52 = vld [vmem:[%s0 + $0x18] sm:$0xff]
    %v53 = vld [vmem:[#allocation2] sm:$0xff]
    %v54 = vld [vmem:[#allocation2 + $0x8] sm:$0xff]
    %v55 = vld [vmem:[#allocation2 + $0x10] sm:$0xff]
    %v56 = vld [vmem:[#allocation2 + $0x18] sm:$0xff]
    %v57 = vld [vmem:[%s2] sm:$0x1]
    %v59 = vlaneseq
    %v60 = vshrl.u32 %v59, 7
    %v61 = vsub.s32 0, %v60
    %v62 = vrot.slane %v57, %v61
    %v64 = vsub.f32 %v53, %v62
    %v65 = vsub.f32 %v54, %v62
    %v66 = vsub.f32 %v55, %v62
    %v67 = vsub.f32 %v56, %v62
    %v68 = vlaneseq
    %v69 = vshrl.u32 %v68, 7
    %v70 = vadd.s32 %v69, 8
    %v71 = vadd.s32 %v69, 16
    %v72 = vadd.s32 %v69, 24
    %v73 = vlaneseq
    %v74 = vand.u32 %v73, 127
    %vm75 = vcmp.ge.s32.totalorder %v69, %v74
    %vm76 = vcmp.ge.s32.totalorder %v70, %v74
    %vm77 = vcmp.ge.s32.totalorder %v71, %v74
    %vm78 = vcmp.ge.s32.totalorder %v72, %v74
    %vm79 = vcmp.lt.s32.totalorder %v74, 16
    %vm80 = vcmp.ge.s32.totalorder %v69, 16
    %vm81 = vcmp.ge.s32.totalorder %v70, 16
    %vm82 = vcmp.ge.s32.totalorder %v71, 16
    %vm83 = vcmp.ge.s32.totalorder %v72, 16
    %vm84 = vmand %vm79, %vm80
    %vm85 = vmand %vm79, %vm81
    %vm86 = vmand %vm79, %vm82
    %vm87 = vmand %vm79, %vm83
    %vm88 = vmxor %vm84, 1
    %vm89 = vmxor %vm85, 1
    %vm90 = vmxor %vm86, 1
    %vm91 = vmxor %vm87, 1
    %vm92 = vmand %vm75, %vm88
    %vm93 = vmand %vm76, %vm89
    %vm94 = vmand %vm77, %vm90
    %vm95 = vmand %vm78, %vm91
    %v96 = vsub.s32 %v69, 16
    %v97 = vsub.s32 %v70, 16
    %v98 = vsub.s32 %v72, 16
    %v99 = vsel %vm80, %v96, %v69
    %v100 = vsel %vm81, %v97, %v70
    %v101 = vsel %vm82, %v69, %v71
    %v102 = vsel %vm83, %v98, %v72
    %v103 = vcvt.s32.f32 %v99
    %v104 = vcvt.s32.f32 %v100
    %v105 = vcvt.s32.f32 %v101
    %v106 = vcvt.s32.f32 %v102
    %v107 = vadd.f32 %v103, 1.0
    %v108 = vadd.f32 %v104, 1.0
    %v109 = vadd.f32 %v105, 1.0
    %v110 = vadd.f32 %v106, 1.0
    %v111 = vrcp.pop %v107
    %v112 = vmul.f32 1.0, %v111
    %v113 = vrcp.pop %v108
    %v114 = vmul.f32 1.0, %v113
    %v115 = vrcp.pop %v109
    %v116 = vmul.f32 1.0, %v115
    %v117 = vrcp.pop %v110
    %v118 = vmul.f32 1.0, %v117
    %v119 = vld [vmem:[%s3] sm:$0x1]
    %v120 = vlaneseq
    %v121 = vshrl.u32 %v120, 7
    %v122 = vsub.s32 0, %v121
    %v123 = vrot.slane %v119, %v122
    %v124 = vmul.f32 %v49, %v123
    %v125 = vmul.f32 %v50, %v123
    %v126 = vmul.f32 %v51, %v123
    %v127 = vmul.f32 %v52, %v123
    %vm128 = vcmask 261120
    %v130 = vsel %vm128, %v124, 0
    %v133 = vsel %vm128, %v125, 0
    %v136 = vsel %vm128, %v126, 0
    %v139 = vsel %vm128, %v127, 0
    %141 = vmatprep.subr.mxu0 0.0
    %142 = vmatpush1.xpose.msra.mxu0 0.0
    %143 = vmatprep.subr.mxu0 0.0
    %144 = vmatpush1.xpose.msra.mxu0 0.0
    %145 = vmatprep.subr.mxu0 0.0
    %146 = vmatpush1.xpose.msra.mxu0 0.0
    %147 = vmatprep.subr.mxu0 0.0
    %148 = vmatpush1.xpose.msra.mxu0 0.0
    %149 = vmatprep.subr.mxu0 0.0
    %150 = vmatpush1.xpose.msra.mxu0 0.0
    %151 = vmatprep.subr.mxu0 0.0
    %152 = vmatpush1.xpose.msra.mxu0 0.0
    %153 = vmatprep.subr.mxu0 0.0
    %154 = vmatpush1.xpose.msra.mxu0 0.0
    %155 = vmatprep.subr.mxu0 0.0
    %156 = vmatpush1.xpose.msra.mxu0 0.0
    %157 = vmatprep.subr.mxu0 0.0
    %158 = vmatpush1.xpose.msra.mxu0 0.0
    %159 = vmatprep.subr.mxu0 0.0
    %160 = vmatpush1.xpose.msra.mxu0 0.0
    %161 = vmatprep.subr.mxu0 0.0
    %162 = vmatpush1.xpose.msra.mxu0 0.0
    %163 = vmatprep.subr.mxu0 0.0
    %164 = vmatpush1.xpose.msra.mxu0 0.0
    %165 = vmatprep.subr.mxu0 0.0
    %166 = vmatpush1.xpose.msra.mxu0 %v139
    %167 = vmatprep.subr.mxu0 0.0
    %168 = vmatpush1.xpose.msra.mxu0 %v136
    %169 = vmatprep.subr.mxu0 0.0
    %170 = vmatpush1.xpose.msra.mxu0 %v133
    %171 = vmatprep.subr.mxu0 0.0
    %172 = vmatpush1.xpose.msra.mxu0 %v130
    %173 = vmatprep.subr.mxu0 0.0
    %174 = vmatpush2.xpose.msra.mxu0 0.0
    %175 = vmatprep.subr.mxu0 0.0
    %176 = vmatpush2.xpose.msra.mxu0 0.0
    %177 = vmatprep.subr.mxu0 0.0
    %178 = vmatpush2.xpose.msra.mxu0 0.0
    %179 = vmatprep.subr.mxu0 0.0
    %180 = vmatpush2.xpose.msra.mxu0 0.0
    %181 = vmatprep.subr.mxu0 0.0
    %182 = vmatpush2.xpose.msra.mxu0 0.0
    %183 = vmatprep.subr.mxu0 0.0
    %184 = vmatpush2.xpose.msra.mxu0 0.0
    %185 = vmatprep.subr.mxu0 0.0
    %186 = vmatpush2.xpose.msra.mxu0 0.0
    %187 = vmatprep.subr.mxu0 0.0
    %188 = vmatpush2.xpose.msra.mxu0 0.0
    %189 = vmatprep.subr.mxu0 0.0
    %190 = vmatpush2.xpose.msra.mxu0 0.0
    %191 = vmatprep.subr.mxu0 0.0
    %192 = vmatpush2.xpose.msra.mxu0 0.0
    %193 = vmatprep.subr.mxu0 0.0
    %194 = vmatpush2.xpose.msra.mxu0 0.0
    %195 = vmatprep.subr.mxu0 0.0
    %196 = vmatpush2.xpose.msra.mxu0 0.0
    %197 = vmatprep.subr.mxu0 0.0
    %198 = vmatpush2.xpose.msra.mxu0 0.0
    %199 = vmatprep.subr.mxu0 0.0
    %200 = vmatpush2.xpose.msra.mxu0 0.0
    %201 = vmatprep.subr.mxu0 0.0
    %202 = vmatpush2.xpose.msra.mxu0 0.0
    %203 = vmatprep.subr.mxu0 0.0
    %204 = vmatpush2.xpose.msra.mxu0 0.0
    %205 = vmatprep.mubr.f32.mxu0 0.0
    %206 = vmatmul.mubr.f32.gmra.mxu0 %v130
    %v207 = vpop.f32.mrf.mxu0
    %v208 = vadd.f32 0.0, %v207
    %v209 = vpop.f32.mrf.mxu0
    %210 = vmatprep.mubr.f32.mxu0 0.0
    %211 = vmatmul.mubr.f32.gmra.mxu0 %v133
    %v212 = vpop.f32.mrf.mxu0
    %v213 = vadd.f32 0.0, %v212
    %v214 = vpop.f32.mrf.mxu0
    %215 = vmatprep.mubr.f32.mxu0 0.0
    %216 = vmatmul.mubr.f32.gmra.mxu0 %v136
    %v217 = vpop.f32.mrf.mxu0
    %v218 = vadd.f32 0.0, %v217
    %v219 = vpop.f32.mrf.mxu0
    %220 = vmatprep.mubr.f32.mxu0 0.0
    %221 = vmatmul.mubr.f32.gmra.mxu0 %v139
    %v222 = vpop.f32.mrf.mxu0
    %v223 = vadd.f32 0.0, %v222
    %v224 = vpop.f32.mrf.mxu0
    %225 = vdwg.mxu0
    %v226 = vmul.f32 %v208, 0.17677669
    %v227 = vmul.f32 %v213, 0.17677669
    %v228 = vmul.f32 %v218, 0.17677669
    %v229 = vmul.f32 %v223, 0.17677669
    %v230 = vsel %vm92, %v226, -inf
    %v231 = vsel %vm93, %v227, -inf
    %v232 = vsel %vm94, %v228, -inf
    %v233 = vsel %vm95, %v229, -inf
    %v234 = vsel %vm128, %v230, -inf
    %235 = vmax.xlane.f32.xlu0 %v234
    %v236 = vpop.xlane.xlu0 %235
    %v237 = vsel %vm128, %v231, -inf
    %238 = vmax.xlane.f32.xlu0 %v237
    %v239 = vpop.xlane.xlu0 %238
    %v240 = vsel %vm128, %v232, -inf
    %241 = vmax.xlane.f32.xlu0 %v240
    %v242 = vpop.xlane.xlu0 %241
    %v243 = vsel %vm128, %v233, -inf
    %244 = vmax.xlane.f32.xlu0 %v243
    %v245 = vpop.xlane.xlu0 %244
    %v246 = vsub.f32 %v230, %v236
    %v247 = vsub.f32 %v231, %v239
    %v248 = vsub.f32 %v232, %v242
    %v249 = vsub.f32 %v233, %v245
    %v250 = vmul.f32 %v246, 1.442695
    %v251 = vpow.pop %v250
    %v252 = vmul.f32 %v247, 1.442695
    %v253 = vpow.pop %v252
    %v254 = vmul.f32 %v248, 1.442695
    %v255 = vpow.pop %v254
    %v256 = vmul.f32 %v249, 1.442695
    %v257 = vpow.pop %v256
    %v258 = vsel %vm128, %v251, 0.0
    %259 = vadd.xlane.f32.xlu0 %v258
    %v260 = vpop.xlane.xlu0 %259
    %v261 = vsel %vm128, %v253, 0.0
    %262 = vadd.xlane.f32.xlu0 %v261
    %v263 = vpop.xlane.xlu0 %262
    %v264 = vsel %vm128, %v255, 0.0
    %265 = vadd.xlane.f32.xlu0 %v264
    %v266 = vpop.xlane.xlu0 %265
    %v267 = vsel %vm128, %v257, 0.0
    %268 = vadd.xlane.f32.xlu0 %v267
    %v269 = vpop.xlane.xlu0 %268
    %v270 = vrcp.pop %v260
    %v271 = vrcp.pop %v263
    %v272 = vrcp.pop %v266
    %v273 = vrcp.pop %v269
    %v274 = vmul.f32 %v112, %v270
    %v275 = vmul.f32 %v114, %v271
    %v276 = vmul.f32 %v116, %v272
    %v277 = vmul.f32 %v118, %v273
    %v278 = vmul.f32 %v251, %v274
    %v279 = vmul.f32 %v253, %v275
    %v280 = vmul.f32 %v255, %v276
    %v281 = vmul.f32 %v257, %v277
    %v283 = vsel %vm128, %v278, 0
    %v286 = vsel %vm128, %v279, 0
    %v289 = vsel %vm128, %v280, 0
    %v292 = vsel %vm128, %v281, 0
    %294 = vmatprep.subr.mxu0 0.0
    %295 = vmatpush1.msra.mxu0 0.0
    %296 = vmatprep.subr.mxu0 0.0
    %297 = vmatpush1.msra.mxu0 0.0
    %298 = vmatprep.subr.mxu0 0.0
    %299 = vmatpush1.msra.mxu0 0.0
    %300 = vmatprep.subr.mxu0 0.0
    %301 = vmatpush1.msra.mxu0 0.0
    %302 = vmatprep.subr.mxu0 0.0
    %303 = vmatpush1.msra.mxu0 0.0
    %304 = vmatprep.subr.mxu0 0.0
    %305 = vmatpush1.msra.mxu0 0.0
    %306 = vmatprep.subr.mxu0 0.0
    %307 = vmatpush1.msra.mxu0 0.0
    %308 = vmatprep.subr.mxu0 0.0
    %309 = vmatpush1.msra.mxu0 0.0
    %310 = vmatprep.subr.mxu0 0.0
    %311 = vmatpush1.msra.mxu0 0.0
    %312 = vmatprep.subr.mxu0 0.0
    %313 = vmatpush1.msra.mxu0 0.0
    %314 = vmatprep.subr.mxu0 0.0
    %315 = vmatpush1.msra.mxu0 0.0
    %316 = vmatprep.subr.mxu0 0.0
    %317 = vmatpush1.msra.mxu0 0.0
    %318 = vmatprep.subr.mxu0 0.0
    %319 = vmatpush1.msra.mxu0 %v67
    %320 = vmatprep.subr.mxu0 0.0
    %321 = vmatpush1.msra.mxu0 %v66
    %322 = vmatprep.subr.mxu0 0.0
    %323 = vmatpush1.msra.mxu0 %v65
    %324 = vmatprep.subr.mxu0 0.0
    %325 = vmatpush1.msra.mxu0 %v64
    %326 = vmatprep.subr.mxu0 0.0
    %327 = vmatpush2.msra.mxu0 0.0
    %328 = vmatprep.subr.mxu0 0.0
    %329 = vmatpush2.msra.mxu0 0.0
    %330 = vmatprep.subr.mxu0 0.0
    %331 = vmatpush2.msra.mxu0 0.0
    %332 = vmatprep.subr.mxu0 0.0
    %333 = vmatpush2.msra.mxu0 0.0
    %334 = vmatprep.subr.mxu0 0.0
    %335 = vmatpush2.msra.mxu0 0.0
    %336 = vmatprep.subr.mxu0 0.0
    %337 = vmatpush2.msra.mxu0 0.0
    %338 = vmatprep.subr.mxu0 0.0
    %339 = vmatpush2.msra.mxu0 0.0
    %340 = vmatprep.subr.mxu0 0.0
    %341 = vmatpush2.msra.mxu0 0.0
    %342 = vmatprep.subr.mxu0 0.0
    %343 = vmatpush2.msra.mxu0 0.0
    %344 = vmatprep.subr.mxu0 0.0
    %345 = vmatpush2.msra.mxu0 0.0
    %346 = vmatprep.subr.mxu0 0.0
    %347 = vmatpush2.msra.mxu0 0.0
    %348 = vmatprep.subr.mxu0 0.0
    %349 = vmatpush2.msra.mxu0 0.0
    %350 = vmatprep.subr.mxu0 0.0
    %351 = vmatpush2.msra.mxu0 0.0
    %352 = vmatprep.subr.mxu0 0.0
    %353 = vmatpush2.msra.mxu0 0.0
    %354 = vmatprep.subr.mxu0 0.0
    %355 = vmatpush2.msra.mxu0 0.0
    %356 = vmatprep.subr.mxu0 0.0
    %357 = vmatpush2.msra.mxu0 0.0
    %358 = vmatprep.mubr.f32.mxu0 0.0
    %359 = vmatmul.mubr.f32.gmra.mxu0 %v283
    %v360 = vpop.f32.mrf.mxu0
    %v361 = vadd.f32 0.0, %v360
    %v362 = vpop.f32.mrf.mxu0
    %363 = vmatprep.mubr.f32.mxu0 0.0
    %364 = vmatmul.mubr.f32.gmra.mxu0 %v286
    %v365 = vpop.f32.mrf.mxu0
    %v366 = vadd.f32 0.0, %v365
    %v367 = vpop.f32.mrf.mxu0
    %368 = vmatprep.mubr.f32.mxu0 0.0
    %369 = vmatmul.mubr.f32.gmra.mxu0 %v289
    %v370 = vpop.f32.mrf.mxu0
    %v371 = vadd.f32 0.0, %v370
    %v372 = vpop.f32.mrf.mxu0
    %373 = vmatprep.mubr.f32.mxu0 0.0
    %374 = vmatmul.mubr.f32.gmra.mxu0 %v292
    %v375 = vpop.f32.mrf.mxu0
    %v376 = vadd.f32 0.0, %v375
    %v377 = vpop.f32.mrf.mxu0
    %378 = vdwg.mxu0
    %v379 = vld [vmem:[#allocation5] sm:$0xff]
    %v380 = vld [vmem:[#allocation5 + $0x8] sm:$0xff]
    %v381 = vld [vmem:[#allocation5 + $0x10] sm:$0xff]
    %v382 = vld [vmem:[#allocation5 + $0x18] sm:$0xff]
    %v383 = vld [vmem:[%s3 + $0x1] sm:$0x1]
    %v384 = vlaneseq
    %v385 = vshrl.u32 %v384, 7
    %v386 = vsub.s32 0, %v385
    %v387 = vrot.slane %v383, %v386
    %v388 = vmul.f32 %v49, %v387
    %v389 = vmul.f32 %v50, %v387
    %v390 = vmul.f32 %v51, %v387
    %v391 = vmul.f32 %v52, %v387
    %v393 = vsel %vm128, %v388, 0
    %v396 = vsel %vm128, %v389, 0
    %v399 = vsel %vm128, %v390, 0
    %v402 = vsel %vm128, %v391, 0
    %404 = vmatprep.subr.mxu0 0.0
    %405 = vmatpush1.xpose.msra.mxu0 0.0
    %406 = vmatprep.subr.mxu0 0.0
    %407 = vmatpush1.xpose.msra.mxu0 0.0
    %408 = vmatprep.subr.mxu0 0.0
    %409 = vmatpush1.xpose.msra.mxu0 0.0
    %410 = vmatprep.subr.mxu0 0.0
    %411 = vmatpush1.xpose.msra.mxu0 0.0
    %412 = vmatprep.subr.mxu0 0.0
    %413 = vmatpush1.xpose.msra.mxu0 0.0
    %414 = vmatprep.subr.mxu0 0.0
    %415 = vmatpush1.xpose.msra.mxu0 0.0
    %416 = vmatprep.subr.mxu0 0.0
    %417 = vmatpush1.xpose.msra.mxu0 0.0
    %418 = vmatprep.subr.mxu0 0.0
    %419 = vmatpush1.xpose.msra.mxu0 0.0
    %420 = vmatprep.subr.mxu0 0.0
    %421 = vmatpush1.xpose.msra.mxu0 0.0
    %422 = vmatprep.subr.mxu0 0.0
    %423 = vmatpush1.xpose.msra.mxu0 0.0
    %424 = vmatprep.subr.mxu0 0.0
    %425 = vmatpush1.xpose.msra.mxu0 0.0
    %426 = vmatprep.subr.mxu0 0.0
    %427 = vmatpush1.xpose.msra.mxu0 0.0
    %428 = vmatprep.subr.mxu0 0.0
    %429 = vmatpush1.xpose.msra.mxu0 %v402
    %430 = vmatprep.subr.mxu0 0.0
    %431 = vmatpush1.xpose.msra.mxu0 %v399
    %432 = vmatprep.subr.mxu0 0.0
    %433 = vmatpush1.xpose.msra.mxu0 %v396
    %434 = vmatprep.subr.mxu0 0.0
    %435 = vmatpush1.xpose.msra.mxu0 %v393
    %436 = vmatprep.subr.mxu0 0.0
    %437 = vmatpush2.xpose.msra.mxu0 0.0
    %438 = vmatprep.subr.mxu0 0.0
    %439 = vmatpush2.xpose.msra.mxu0 0.0
    %440 = vmatprep.subr.mxu0 0.0
    %441 = vmatpush2.xpose.msra.mxu0 0.0
    %442 = vmatprep.subr.mxu0 0.0
    %443 = vmatpush2.xpose.msra.mxu0 0.0
    %444 = vmatprep.subr.mxu0 0.0
    %445 = vmatpush2.xpose.msra.mxu0 0.0
    %446 = vmatprep.subr.mxu0 0.0
    %447 = vmatpush2.xpose.msra.mxu0 0.0
    %448 = vmatprep.subr.mxu0 0.0
    %449 = vmatpush2.xpose.msra.mxu0 0.0
    %450 = vmatprep.subr.mxu0 0.0
    %451 = vmatpush2.xpose.msra.mxu0 0.0
    %452 = vmatprep.subr.mxu0 0.0
    %453 = vmatpush2.xpose.msra.mxu0 0.0
    %454 = vmatprep.subr.mxu0 0.0
    %455 = vmatpush2.xpose.msra.mxu0 0.0
    %456 = vmatprep.subr.mxu0 0.0
    %457 = vmatpush2.xpose.msra.mxu0 0.0
    %458 = vmatprep.subr.mxu0 0.0
    %459 = vmatpush2.xpose.msra.mxu0 0.0
    %460 = vmatprep.subr.mxu0 0.0
    %461 = vmatpush2.xpose.msra.mxu0 0.0
    %462 = vmatprep.subr.mxu0 0.0
    %463 = vmatpush2.xpose.msra.mxu0 0.0
    %464 = vmatprep.subr.mxu0 0.0
    %465 = vmatpush2.xpose.msra.mxu0 0.0
    %466 = vmatprep.subr.mxu0 0.0
    %467 = vmatpush2.xpose.msra.mxu0 0.0
    %468 = vmatprep.mubr.f32.mxu0 0.0
    %469 = vmatmul.mubr.f32.gmra.mxu0 %v393
    %v470 = vpop.f32.mrf.mxu0
    %v471 = vadd.f32 0.0, %v470
    %v472 = vpop.f32.mrf.mxu0
    %473 = vmatprep.mubr.f32.mxu0 0.0
    %474 = vmatmul.mubr.f32.gmra.mxu0 %v396
    %v475 = vpop.f32.mrf.mxu0
    %v476 = vadd.f32 0.0, %v475
    %v477 = vpop.f32.mrf.mxu0
    %478 = vmatprep.mubr.f32.mxu0 0.0
    %479 = vmatmul.mubr.f32.gmra.mxu0 %v399
    %v480 = vpop.f32.mrf.mxu0
    %v481 = vadd.f32 0.0, %v480
    %v482 = vpop.f32.mrf.mxu0
    %483 = vmatprep.mubr.f32.mxu0 0.0
    %484 = vmatmul.mubr.f32.gmra.mxu0 %v402
    %v485 = vpop.f32.mrf.mxu0
    %v486 = vadd.f32 0.0, %v485
    %v487 = vpop.f32.mrf.mxu0
    %488 = vdwg.mxu0
    %v489 = vmul.f32 %v471, 0.17677669
    %v490 = vmul.f32 %v476, 0.17677669
    %v491 = vmul.f32 %v481, 0.17677669
    %v492 = vmul.f32 %v486, 0.17677669
    %v493 = vsel %vm92, %v489, -inf
    %v494 = vsel %vm93, %v490, -inf
    %v495 = vsel %vm94, %v491, -inf
    %v496 = vsel %vm95, %v492, -inf
    %v497 = vsel %vm128, %v493, -inf
    %498 = vmax.xlane.f32.xlu0 %v497
    %v499 = vpop.xlane.xlu0 %498
    %v500 = vsel %vm128, %v494, -inf
    %501 = vmax.xlane.f32.xlu0 %v500
    %v502 = vpop.xlane.xlu0 %501
    %v503 = vsel %vm128, %v495, -inf
    %504 = vmax.xlane.f32.xlu0 %v503
    %v505 = vpop.xlane.xlu0 %504
    %v506 = vsel %vm128, %v496, -inf
    %507 = vmax.xlane.f32.xlu0 %v506
    %v508 = vpop.xlane.xlu0 %507
    %v509 = vsub.f32 %v493, %v499
    %v510 = vsub.f32 %v494, %v502
    %v511 = vsub.f32 %v495, %v505
    %v512 = vsub.f32 %v496, %v508
    %v513 = vmul.f32 %v509, 1.442695
    %v514 = vpow.pop %v513
    %v515 = vmul.f32 %v510, 1.442695
    %v516 = vpow.pop %v515
    %v517 = vmul.f32 %v511, 1.442695
    %v518 = vpow.pop %v517
    %v519 = vmul.f32 %v512, 1.442695
    %v520 = vpow.pop %v519
    %v521 = vsel %vm128, %v514, 0.0
    %522 = vadd.xlane.f32.xlu0 %v521
    %v523 = vpop.xlane.xlu0 %522
    %v524 = vsel %vm128, %v516, 0.0
    %525 = vadd.xlane.f32.xlu0 %v524
    %v526 = vpop.xlane.xlu0 %525
    %v527 = vsel %vm128, %v518, 0.0
    %528 = vadd.xlane.f32.xlu0 %v527
    %v529 = vpop.xlane.xlu0 %528
    %v530 = vsel %vm128, %v520, 0.0
    %531 = vadd.xlane.f32.xlu0 %v530
    %v532 = vpop.xlane.xlu0 %531
    %v533 = vrcp.pop %v523
    %v534 = vrcp.pop %v526
    %v535 = vrcp.pop %v529
    %v536 = vrcp.pop %v532
    %v537 = vmul.f32 %v112, %v533
    %v538 = vmul.f32 %v114, %v534
    %v539 = vmul.f32 %v116, %v535
    %v540 = vmul.f32 %v118, %v536
    %v541 = vmul.f32 %v514, %v537
    %v542 = vmul.f32 %v516, %v538
    %v543 = vmul.f32 %v518, %v539
    %v544 = vmul.f32 %v520, %v540
    %v546 = vsel %vm128, %v541, 0
    %v549 = vsel %vm128, %v542, 0
    %v552 = vsel %vm128, %v543, 0
    %v555 = vsel %vm128, %v544, 0
    %557 = vmatprep.subr.mxu0 0.0
    %558 = vmatpush1.msra.mxu0 0.0
    %559 = vmatprep.subr.mxu0 0.0
    %560 = vmatpush1.msra.mxu0 0.0
    %561 = vmatprep.subr.mxu0 0.0
    %562 = vmatpush1.msra.mxu0 0.0
    %563 = vmatprep.subr.mxu0 0.0
    %564 = vmatpush1.msra.mxu0 0.0
    %565 = vmatprep.subr.mxu0 0.0
    %566 = vmatpush1.msra.mxu0 0.0
    %567 = vmatprep.subr.mxu0 0.0
    %568 = vmatpush1.msra.mxu0 0.0
    %569 = vmatprep.subr.mxu0 0.0
    %570 = vmatpush1.msra.mxu0 0.0
    %571 = vmatprep.subr.mxu0 0.0
    %572 = vmatpush1.msra.mxu0 0.0
    %573 = vmatprep.subr.mxu0 0.0
    %574 = vmatpush1.msra.mxu0 0.0
    %575 = vmatprep.subr.mxu0 0.0
    %576 = vmatpush1.msra.mxu0 0.0
    %577 = vmatprep.subr.mxu0 0.0
    %578 = vmatpush1.msra.mxu0 0.0
    %579 = vmatprep.subr.mxu0 0.0
    %580 = vmatpush1.msra.mxu0 0.0
    %581 = vmatprep.subr.mxu0 0.0
    %582 = vmatpush1.msra.mxu0 %v67
    %583 = vmatprep.subr.mxu0 0.0
    %584 = vmatpush1.msra.mxu0 %v66
    %585 = vmatprep.subr.mxu0 0.0
    %586 = vmatpush1.msra.mxu0 %v65
    %587 = vmatprep.subr.mxu0 0.0
    %588 = vmatpush1.msra.mxu0 %v64
    %589 = vmatprep.subr.mxu0 0.0
    %590 = vmatpush2.msra.mxu0 0.0
    %591 = vmatprep.subr.mxu0 0.0
    %592 = vmatpush2.msra.mxu0 0.0
    %593 = vmatprep.subr.mxu0 0.0
    %594 = vmatpush2.msra.mxu0 0.0
    %595 = vmatprep.subr.mxu0 0.0
    %596 = vmatpush2.msra.mxu0 0.0
    %597 = vmatprep.subr.mxu0 0.0
    %598 = vmatpush2.msra.mxu0 0.0
    %599 = vmatprep.subr.mxu0 0.0
    %600 = vmatpush2.msra.mxu0 0.0
    %601 = vmatprep.subr.mxu0 0.0
    %602 = vmatpush2.msra.mxu0 0.0
    %603 = vmatprep.subr.mxu0 0.0
    %604 = vmatpush2.msra.mxu0 0.0
    %605 = vmatprep.subr.mxu0 0.0
    %606 = vmatpush2.msra.mxu0 0.0
    %607 = vmatprep.subr.mxu0 0.0
    %608 = vmatpush2.msra.mxu0 0.0
    %609 = vmatprep.subr.mxu0 0.0
    %610 = vmatpush2.msra.mxu0 0.0
    %611 = vmatprep.subr.mxu0 0.0
    %612 = vmatpush2.msra.mxu0 0.0
    %613 = vmatprep.subr.mxu0 0.0
    %614 = vmatpush2.msra.mxu0 0.0
    %615 = vmatprep.subr.mxu0 0.0
    %616 = vmatpush2.msra.mxu0 0.0
    %617 = vmatprep.subr.mxu0 0.0
    %618 = vmatpush2.msra.mxu0 0.0
    %619 = vmatprep.subr.mxu0 0.0
    %620 = vmatpush2.msra.mxu0 0.0
    %621 = vmatprep.mubr.f32.mxu0 0.0
    %622 = vmatmul.mubr.f32.gmra.mxu0 %v546
    %v623 = vpop.f32.mrf.mxu0
    %v624 = vadd.f32 0.0, %v623
    %v625 = vpop.f32.mrf.mxu0
    %626 = vmatprep.mubr.f32.mxu0 0.0
    %627 = vmatmul.mubr.f32.gmra.mxu0 %v549
    %v628 = vpop.f32.mrf.mxu0
    %v629 = vadd.f32 0.0, %v628
    %v630 = vpop.f32.mrf.mxu0
    %631 = vmatprep.mubr.f32.mxu0 0.0
    %632 = vmatmul.mubr.f32.gmra.mxu0 %v552
    %v633 = vpop.f32.mrf.mxu0
    %v634 = vadd.f32 0.0, %v633
    %v635 = vpop.f32.mrf.mxu0
    %636 = vmatprep.mubr.f32.mxu0 0.0
    %637 = vmatmul.mubr.f32.gmra.mxu0 %v555
    %v638 = vpop.f32.mrf.mxu0
    %v639 = vadd.f32 0.0, %v638
    %v640 = vpop.f32.mrf.mxu0
    %641 = vdwg.mxu0
    %646 = vrot.lane.b32.xlu0 %v379, 96
    %v647 = vpop.permute.xlu0 %646
    %648 = vrot.lane.b32.xlu0 %v380, 96
    %v649 = vpop.permute.xlu0 %648
    %650 = vrot.lane.b32.xlu0 %v381, 96
    %v651 = vpop.permute.xlu0 %650
    %652 = vrot.lane.b32.xlu0 %v382, 96
    %v653 = vpop.permute.xlu0 %652
    %v655 = vsel %vm128, %v624, 0
    %v658 = vsel %vm128, %v629, 0
    %v661 = vsel %vm128, %v634, 0
    %v664 = vsel %vm128, %v639, 0
    %v666 = vsel %vm128, %v647, 0
    %v668 = vsel %vm128, %v649, 0
    %v670 = vsel %vm128, %v651, 0
    %v672 = vsel %vm128, %v653, 0
    %674 = vmatprep.subr.mxu0 0.0
    %675 = vmatpush1.xpose.msra.mxu0 0.0
    %676 = vmatprep.subr.mxu0 0.0
    %677 = vmatpush1.xpose.msra.mxu0 0.0
    %678 = vmatprep.subr.mxu0 0.0
    %679 = vmatpush1.xpose.msra.mxu0 0.0
    %680 = vmatprep.subr.mxu0 0.0
    %681 = vmatpush1.xpose.msra.mxu0 0.0
    %682 = vmatprep.subr.mxu0 0.0
    %683 = vmatpush1.xpose.msra.mxu0 0.0
    %684 = vmatprep.subr.mxu0 0.0
    %685 = vmatpush1.xpose.msra.mxu0 0.0
    %686 = vmatprep.subr.mxu0 0.0
    %687 = vmatpush1.xpose.msra.mxu0 0.0
    %688 = vmatprep.subr.mxu0 0.0
    %689 = vmatpush1.xpose.msra.mxu0 0.0
    %690 = vmatprep.subr.mxu0 0.0
    %691 = vmatpush1.xpose.msra.mxu0 0.0
    %692 = vmatprep.subr.mxu0 0.0
    %693 = vmatpush1.xpose.msra.mxu0 0.0
    %694 = vmatprep.subr.mxu0 0.0
    %695 = vmatpush1.xpose.msra.mxu0 0.0
    %696 = vmatprep.subr.mxu0 0.0
    %697 = vmatpush1.xpose.msra.mxu0 0.0
    %698 = vmatprep.subr.mxu0 0.0
    %699 = vmatpush1.xpose.msra.mxu0 %v672
    %700 = vmatprep.subr.mxu0 0.0
    %701 = vmatpush1.xpose.msra.mxu0 %v670
    %702 = vmatprep.subr.mxu0 0.0
    %703 = vmatpush1.xpose.msra.mxu0 %v668
    %704 = vmatprep.subr.mxu0 0.0
    %705 = vmatpush1.xpose.msra.mxu0 %v666
    %706 = vmatprep.subr.mxu0 0.0
    %707 = vmatpush2.xpose.msra.mxu0 0.0
    %708 = vmatprep.subr.mxu0 0.0
    %709 = vmatpush2.xpose.msra.mxu0 0.0
    %710 = vmatprep.subr.mxu0 0.0
    %711 = vmatpush2.xpose.msra.mxu0 0.0
    %712 = vmatprep.subr.mxu0 0.0
    %713 = vmatpush2.xpose.msra.mxu0 0.0
    %714 = vmatprep.subr.mxu0 0.0
    %715 = vmatpush2.xpose.msra.mxu0 0.0
    %716 = vmatprep.subr.mxu0 0.0
    %717 = vmatpush2.xpose.msra.mxu0 0.0
    %718 = vmatprep.subr.mxu0 0.0
    %719 = vmatpush2.xpose.msra.mxu0 0.0
    %720 = vmatprep.subr.mxu0 0.0
    %721 = vmatpush2.xpose.msra.mxu0 0.0
    %722 = vmatprep.subr.mxu0 0.0
    %723 = vmatpush2.xpose.msra.mxu0 0.0
    %724 = vmatprep.subr.mxu0 0.0
    %725 = vmatpush2.xpose.msra.mxu0 0.0
    %726 = vmatprep.subr.mxu0 0.0
    %727 = vmatpush2.xpose.msra.mxu0 0.0
    %728 = vmatprep.subr.mxu0 0.0
    %729 = vmatpush2.xpose.msra.mxu0 0.0
    %730 = vmatprep.subr.mxu0 0.0
    %731 = vmatpush2.xpose.msra.mxu0 0.0
    %732 = vmatprep.subr.mxu0 0.0
    %733 = vmatpush2.xpose.msra.mxu0 0.0
    %734 = vmatprep.subr.mxu0 0.0
    %735 = vmatpush2.xpose.msra.mxu0 0.0
    %736 = vmatprep.subr.mxu0 0.0
    %737 = vmatpush2.xpose.msra.mxu0 0.0
    %738 = vmatprep.mubr.f32.mxu0 0.0
    %739 = vmatmul.mubr.f32.gmra.mxu0 %v655
    %v740 = vpop.f32.mrf.mxu0
    %v741 = vadd.f32 0.0, %v740
    %v742 = vpop.f32.mrf.mxu0
    %743 = vmatprep.mubr.f32.mxu0 0.0
    %744 = vmatmul.mubr.f32.gmra.mxu0 %v658
    %v745 = vpop.f32.mrf.mxu0
    %v746 = vadd.f32 0.0, %v745
    %v747 = vpop.f32.mrf.mxu0
    %748 = vmatprep.mubr.f32.mxu0 0.0
    %749 = vmatmul.mubr.f32.gmra.mxu0 %v661
    %v750 = vpop.f32.mrf.mxu0
    %v751 = vadd.f32 0.0, %v750
    %v752 = vpop.f32.mrf.mxu0
    %753 = vmatprep.mubr.f32.mxu0 0.0
    %754 = vmatmul.mubr.f32.gmra.mxu0 %v664
    %v755 = vpop.f32.mrf.mxu0
    %v756 = vadd.f32 0.0, %v755
    %v757 = vpop.f32.mrf.mxu0
    %758 = vdwg.mxu0
    %v760 = vsel %vm128, %v361, 0
    %v763 = vsel %vm128, %v366, 0
    %v766 = vsel %vm128, %v371, 0
    %v769 = vsel %vm128, %v376, 0
    %v771 = vsel %vm128, %v379, 0
    %v773 = vsel %vm128, %v380, 0
    %v775 = vsel %vm128, %v381, 0
    %v777 = vsel %vm128, %v382, 0
    %779 = vmatprep.subr.mxu0 0.0
    %780 = vmatpush1.xpose.msra.mxu0 0.0
    %781 = vmatprep.subr.mxu0 0.0
    %782 = vmatpush1.xpose.msra.mxu0 0.0
    %783 = vmatprep.subr.mxu0 0.0
    %784 = vmatpush1.xpose.msra.mxu0 0.0
    %785 = vmatprep.subr.mxu0 0.0
    %786 = vmatpush1.xpose.msra.mxu0 0.0
    %787 = vmatprep.subr.mxu0 0.0
    %788 = vmatpush1.xpose.msra.mxu0 0.0
    %789 = vmatprep.subr.mxu0 0.0
    %790 = vmatpush1.xpose.msra.mxu0 0.0
    %791 = vmatprep.subr.mxu0 0.0
    %792 = vmatpush1.xpose.msra.mxu0 0.0
    %793 = vmatprep.subr.mxu0 0.0
    %794 = vmatpush1.xpose.msra.mxu0 0.0
    %795 = vmatprep.subr.mxu0 0.0
    %796 = vmatpush1.xpose.msra.mxu0 0.0
    %797 = vmatprep.subr.mxu0 0.0
    %798 = vmatpush1.xpose.msra.mxu0 0.0
    %799 = vmatprep.subr.mxu0 0.0
    %800 = vmatpush1.xpose.msra.mxu0 0.0
    %801 = vmatprep.subr.mxu0 0.0
    %802 = vmatpush1.xpose.msra.mxu0 0.0
    %803 = vmatprep.subr.mxu0 0.0
    %804 = vmatpush1.xpose.msra.mxu0 %v777
    %805 = vmatprep.subr.mxu0 0.0
    %806 = vmatpush1.xpose.msra.mxu0 %v775
    %807 = vmatprep.subr.mxu0 0.0
    %808 = vmatpush1.xpose.msra.mxu0 %v773
    %809 = vmatprep.subr.mxu0 0.0
    %810 = vmatpush1.xpose.msra.mxu0 %v771
    %811 = vmatprep.subr.mxu0 0.0
    %812 = vmatpush2.xpose.msra.mxu0 0.0
    %813 = vmatprep.subr.mxu0 0.0
    %814 = vmatpush2.xpose.msra.mxu0 0.0
    %815 = vmatprep.subr.mxu0 0.0
    %816 = vmatpush2.xpose.msra.mxu0 0.0
    %817 = vmatprep.subr.mxu0 0.0
    %818 = vmatpush2.xpose.msra.mxu0 0.0
    %819 = vmatprep.subr.mxu0 0.0
    %820 = vmatpush2.xpose.msra.mxu0 0.0
    %821 = vmatprep.subr.mxu0 0.0
    %822 = vmatpush2.xpose.msra.mxu0 0.0
    %823 = vmatprep.subr.mxu0 0.0
    %824 = vmatpush2.xpose.msra.mxu0 0.0
    %825 = vmatprep.subr.mxu0 0.0
    %826 = vmatpush2.xpose.msra.mxu0 0.0
    %827 = vmatprep.subr.mxu0 0.0
    %828 = vmatpush2.xpose.msra.mxu0 0.0
    %829 = vmatprep.subr.mxu0 0.0
    %830 = vmatpush2.xpose.msra.mxu0 0.0
    %831 = vmatprep.subr.mxu0 0.0
    %832 = vmatpush2.xpose.msra.mxu0 0.0
    %833 = vmatprep.subr.mxu0 0.0
    %834 = vmatpush2.xpose.msra.mxu0 0.0
    %835 = vmatprep.subr.mxu0 0.0
    %836 = vmatpush2.xpose.msra.mxu0 0.0
    %837 = vmatprep.subr.mxu0 0.0
    %838 = vmatpush2.xpose.msra.mxu0 0.0
    %839 = vmatprep.subr.mxu0 0.0
    %840 = vmatpush2.xpose.msra.mxu0 0.0
    %841 = vmatprep.subr.mxu0 0.0
    %842 = vmatpush2.xpose.msra.mxu0 0.0
    %843 = vmatprep.mubr.f32.mxu0 0.0
    %844 = vmatmul.mubr.f32.gmra.mxu0 %v760
    %v845 = vpop.f32.mrf.mxu0
    %v846 = vadd.f32 %v741, %v845
    %v847 = vpop.f32.mrf.mxu0
    %848 = vmatprep.mubr.f32.mxu0 0.0
    %849 = vmatmul.mubr.f32.gmra.mxu0 %v763
    %v850 = vpop.f32.mrf.mxu0
    %v851 = vadd.f32 %v746, %v850
    %v852 = vpop.f32.mrf.mxu0
    %853 = vmatprep.mubr.f32.mxu0 0.0
    %854 = vmatmul.mubr.f32.gmra.mxu0 %v766
    %v855 = vpop.f32.mrf.mxu0
    %v856 = vadd.f32 %v751, %v855
    %v857 = vpop.f32.mrf.mxu0
    %858 = vmatprep.mubr.f32.mxu0 0.0
    %859 = vmatmul.mubr.f32.gmra.mxu0 %v769
    %v860 = vpop.f32.mrf.mxu0
    %v861 = vadd.f32 %v756, %v860
    %v862 = vpop.f32.mrf.mxu0
    %863 = vdwg.mxu0
    %864 = vst.msk [vmem:[#allocation7] sm:$0xff] %vm128, %v846
    %865 = vst.msk [vmem:[#allocation7 + $0x8] sm:$0xff] %vm128, %v851
    %866 = vst.msk [vmem:[#allocation7 + $0x10] sm:$0xff] %vm128, %v856
    %867 = vst.msk [vmem:[#allocation7 + $0x18] sm:$0xff] %vm128, %v861
    // Predicated region
    $region30: #{attention_forward.1} parent=1 // pred_check
      _
    $region31: #{attention_forward.1} parent=1 // pred_check_branch
      %869 = sbr.rel (0) target = $region33
    $region32: #{attention_forward.1} parent=1 // pred_region
      %s871 = ssub.s32 512, 512
      %872 = vsyncadd [#allocation4], %s871
      %s873 = sshll.u32 [#allocation7], 4
      %s874 = int_to_ptr.vmem [resolvable:$true] %s873
      %879 = dma.vmem_to_hbm [thread:$0]  %s874, 512, %s5, [#allocation4], 128, 128, 8
    $region33: #{attention_forward.1} parent=1 // pred_fallthru
      _
    // Predicated region
    $region34: #{attention_forward.1} parent=1 // pred_check
      _
    $region35: #{attention_forward.1} parent=1 // pred_check_branch
      %881 = sbr.rel (0) target = $region37
    $region36: #{attention_forward.1} parent=1 // pred_region
      %882 = dma.done [#allocation4], 512
    $region37: #{attention_forward.1} parent=1 // pred_fallthru
      _
    %883 = vsyncpa [#allocation3], 1
    %884 = vsyncpa [#allocation6], 1
    %885 = vsyncpa [#allocation4], 1

</llo_original>
